<compile_context>
chip_gen: v5e
topology: v5e:2x2
jax: 0.10.0
libtpu: 0.0.40
codegen_flags: <defaults>
</compile_context>

<pallas_src>
import functools

import jax
import jax.numpy as jnp
from jax.experimental import pallas as pl
from jax.experimental.pallas import tpu as pltpu


def _round_up(x, m):
    return ((x + m - 1) // m) * m


def _encoder_kernel(x_ref, w1_ref, b1_ref, w2_ref, b2_ref, w3_ref, b3_ref, o_ref,
                    *, compute_dtype):
    x = x_ref[...]
    if compute_dtype is not None and x.dtype != compute_dtype:
        x = x.astype(compute_dtype)

    # Layer 1: Linear + ReLU (MXU matmul, f32 accumulation; bias add / ReLU on VPU in f32)
    h = jnp.dot(x, w1_ref[...], preferred_element_type=jnp.float32)
    h = jnp.maximum(h + b1_ref[...].astype(jnp.float32), 0.0)
    if compute_dtype is not None:
        h = h.astype(compute_dtype)

    # Layer 2: Linear + ReLU
    h = jnp.dot(h, w2_ref[...], preferred_element_type=jnp.float32)
    h = jnp.maximum(h + b2_ref[...].astype(jnp.float32), 0.0)
    if compute_dtype is not None:
        h = h.astype(compute_dtype)

    # Layer 3: Linear + ReLU
    h = jnp.dot(h, w3_ref[...], preferred_element_type=jnp.float32)
    o_ref[...] = jnp.maximum(h + b3_ref[...].astype(jnp.float32), 0.0).astype(o_ref.dtype)


def encoder_forward(x, params, *, block_b=None, compute_dtype=None):
    """Run the 3-layer encoder. x: (B, input_size) float32.

    compute_dtype: optionally jnp.bfloat16 to cast weights + activations for the MXU
    (accumulation stays f32). Leave None for exact-f32 behaviour.
    """
    w1, b1, w2, b2, w3, b3 = params
    if compute_dtype is not None:
        # Cast weights at the call boundary so their DMA bytes are halved too.
        w1, w2, w3 = (w.astype(compute_dtype) for w in (w1, w2, w3))

    B, in_dim = x.shape
    h1_dim = w1.shape[1]
    h2_dim = w2.shape[1]
    latent = w3.shape[1]

    if block_b is None:
        # Cap the batch tile: keeps per-buffer VMEM small even on v7x (64 MiB VMEM) and,
        # for large batches, gives many parallel grid steps (pipelined DMA, 2-TC sharding).
        block_b = max(8, min(512, _round_up(B, 8)))
    block_b = max(8, (block_b // 8) * 8)  # multiple of 8 (f32 sublane granularity)

    padded_B = _round_up(B, block_b)
    if padded_B != B:
        x = jnp.pad(x, ((0, padded_B - B), (0, 0)))

    grid = (padded_B // block_b,)

    # Weights/biases use constant index_maps: the same block is reused across grid steps
    # (fetched once), only the x / output tiles stream through the pipeline.
    in_specs = [
        pl.BlockSpec((block_b, in_dim), lambda i: (i, 0)),   # x tile
        pl.BlockSpec((in_dim, h1_dim), lambda i: (0, 0)),    # w1
        pl.BlockSpec((1, h1_dim), lambda i: (0, 0)),         # b1
        pl.BlockSpec((h1_dim, h2_dim), lambda i: (0, 0)),    # w2
        pl.BlockSpec((1, h2_dim), lambda i: (0, 0)),         # b2
        pl.BlockSpec((h2_dim, latent), lambda i: (0, 0)),    # w3
        pl.BlockSpec((1, latent), lambda i: (0, 0)),         # b3
    ]
    out_spec = pl.BlockSpec((block_b, latent), lambda i: (i, 0))

    # Advisory cost estimate so XLA treats this as the tiny kernel it is.
    flops = 2 * padded_B * (in_dim * h1_dim + h1_dim * h2_dim + h2_dim * latent)
    param_bytes = sum(int(a.size) * a.dtype.itemsize for a in (w1, b1, w2, b2, w3, b3))
    bytes_accessed = (int(x.size) * x.dtype.itemsize
                      + padded_B * latent * x.dtype.itemsize
                      + param_bytes)
    cost = pl.CostEstimate(flops=flops, transcendentals=0, bytes_accessed=bytes_accessed)

    kernel = functools.partial(_encoder_kernel, compute_dtype=compute_dtype)

    out = pl.pallas_call(
        kernel,
        out_shape=jax.ShapeDtypeStruct((padded_B, latent), x.dtype),
        grid_spec=pltpu.PrefetchScalarGridSpec(
            num_scalar_prefetch=0,
            grid=grid,
            in_specs=in_specs,
            out_specs=out_spec,
        ),
        compiler_params=pltpu.CompilerParams(
            dimension_semantics=("parallel",),
            vmem_limit_bytes=32 * 1024 * 1024,
        ),
        cost_estimate=cost,
    )(x, w1, b1, w2, b2, w3, b3)

    return out[:B]


def init_linear_params(key, in_features, out_features):
    """Deterministic init mimicking nn.Linear default (uniform +-1/sqrt(in))."""
    kw, kb = jax.random.split(key)
    bound = 1.0 / jnp.sqrt(jnp.float32(in_features))
    # Stored as (in, out) for x @ W layout.
    w = jax.random.uniform(kw, (in_features, out_features), jnp.float32, -bound, bound)
    b = jax.random.uniform(kb, (1, out_features), jnp.float32, -bound, bound)
    return w, b


def encoder_reference(x, params):
    w1, b1, w2, b2, w3, b3 = params
    h = jnp.maximum(x @ w1 + b1, 0.0)
    h = jnp.maximum(h @ w2 + b2, 0.0)
    return jnp.maximum(h @ w3 + b3, 0.0)


if __name__ == "__main__":
    input_size = 32
    latent_space_size = 8
    batch = 60  # not a multiple of block_b -> exercises the pad/slice path too

    key = jax.random.PRNGKey(0)
    kx, k1, k2, k3 = jax.random.split(key, 4)

    x = jax.random.normal(kx, (batch, input_size), jnp.float32)
    w1, b1 = init_linear_params(k1, input_size, input_size // 2)
    w2, b2 = init_linear_params(k2, input_size // 2, input_size // 4)
    w3, b3 = init_linear_params(k3, input_size // 4, latent_space_size)
    params = (w1, b1, w2, b2, w3, b3)

    # block_b=16 -> padded batch 64, grid of 4 "parallel" steps (exercises the tiled path).
    out = encoder_forward(x, params, block_b=16)
    out = jax.block_until_ready(out)

    ref = encoder_reference(x, params)
    assert out.shape == (batch, latent_space_size)
    assert jnp.allclose(out, ref, atol=1e-5, rtol=1e-5), "mismatch vs reference"

    print("KERNEL_OK")
</pallas_src>

<mosaic_0001>
module attributes {stable_mosaic.version = 11 : i64} {
  func.func @_encoder_kernel(%arg0: i32, %arg1: memref<16x32xf32, #tpu.memory_space<vmem>>, %arg2: memref<32x16xf32, #tpu.memory_space<vmem>>, %arg3: memref<1x16xf32, #tpu.memory_space<vmem>>, %arg4: memref<16x8xf32, #tpu.memory_space<vmem>>, %arg5: memref<1x8xf32, #tpu.memory_space<vmem>>, %arg6: memref<8x8xf32, #tpu.memory_space<vmem>>, %arg7: memref<1x8xf32, #tpu.memory_space<vmem>>, %arg8: memref<16x8xf32, #tpu.memory_space<vmem>>) attributes {dimension_semantics = [#tpu.dimension_semantics<parallel>], iteration_bounds = array<i64: 4>, scalar_prefetch = 0 : i64, scratch_operands = 0 : i64, tpu.core_type = #tpu.core_type<tc>, window_params = [{transform_indices = @transform_0, window_bounds = array<i64: 16, 32>}, {pipeline_mode = #tpu.pipeline_mode<synchronous>, transform_indices = @transform_1, window_bounds = array<i64: 32, 16>}, {pipeline_mode = #tpu.pipeline_mode<synchronous>, transform_indices = @transform_2, window_bounds = array<i64: 1, 16>}, {pipeline_mode = #tpu.pipeline_mode<synchronous>, transform_indices = @transform_3, window_bounds = array<i64: 16, 8>}, {pipeline_mode = #tpu.pipeline_mode<synchronous>, transform_indices = @transform_4, window_bounds = array<i64: 1, 8>}, {pipeline_mode = #tpu.pipeline_mode<synchronous>, transform_indices = @transform_5, window_bounds = array<i64: 8, 8>}, {pipeline_mode = #tpu.pipeline_mode<synchronous>, transform_indices = @transform_6, window_bounds = array<i64: 1, 8>}, {transform_indices = @transform_7, window_bounds = array<i64: 16, 8>}]} {
    %c0 = arith.constant 0 : index
    %c0_0 = arith.constant 0 : index
    %0 = vector.load %arg1[%c0, %c0_0] : memref<16x32xf32, #tpu.memory_space<vmem>>, vector<16x32xf32>
    %c0_1 = arith.constant 0 : index
    %c0_2 = arith.constant 0 : index
    %1 = vector.load %arg2[%c0_1, %c0_2] : memref<32x16xf32, #tpu.memory_space<vmem>>, vector<32x16xf32>
    %cst = arith.constant dense<0.000000e+00> : vector<16x16xf32>
    %2 = tpu.matmul %0, %1, %cst {dimension_numbers = #tpu.dot_dimension_numbers<[1], [0], [0], [1], [0, 0, 1, 1], [], []>} : vector<16x32xf32>, vector<32x16xf32>, vector<16x16xf32> -> vector<16x16xf32>
    %c0_3 = arith.constant 0 : index
    %c0_4 = arith.constant 0 : index
    %3 = vector.load %arg3[%c0_3, %c0_4] : memref<1x16xf32, #tpu.memory_space<vmem>>, vector<1x16xf32>
    %4 = vector.broadcast %3 : vector<1x16xf32> to vector<16x16xf32>
    %5 = arith.addf %2, %4 : vector<16x16xf32>
    %cst_5 = arith.constant 0.000000e+00 : f32
    %6 = vector.broadcast %cst_5 : f32 to vector<16x16xf32>
    %7 = arith.maximumf %5, %6 : vector<16x16xf32>
    %c0_6 = arith.constant 0 : index
    %c0_7 = arith.constant 0 : index
    %8 = vector.load %arg4[%c0_6, %c0_7] : memref<16x8xf32, #tpu.memory_space<vmem>>, vector<16x8xf32>
    %cst_8 = arith.constant dense<0.000000e+00> : vector<16x8xf32>
    %9 = tpu.matmul %7, %8, %cst_8 {dimension_numbers = #tpu.dot_dimension_numbers<[1], [0], [0], [1], [0, 0, 1, 1], [], []>} : vector<16x16xf32>, vector<16x8xf32>, vector<16x8xf32> -> vector<16x8xf32>
    %c0_9 = arith.constant 0 : index
    %c0_10 = arith.constant 0 : index
    %10 = vector.load %arg5[%c0_9, %c0_10] : memref<1x8xf32, #tpu.memory_space<vmem>>, vector<1x8xf32>
    %11 = vector.broadcast %10 : vector<1x8xf32> to vector<16x8xf32>
    %12 = arith.addf %9, %11 : vector<16x8xf32>
    %cst_11 = arith.constant 0.000000e+00 : f32
    %13 = vector.broadcast %cst_11 : f32 to vector<16x8xf32>
    %14 = arith.maximumf %12, %13 : vector<16x8xf32>
    %c0_12 = arith.constant 0 : index
    %c0_13 = arith.constant 0 : index
    %15 = vector.load %arg6[%c0_12, %c0_13] : memref<8x8xf32, #tpu.memory_space<vmem>>, vector<8x8xf32>
    %cst_14 = arith.constant dense<0.000000e+00> : vector<16x8xf32>
    %16 = tpu.matmul %14, %15, %cst_14 {dimension_numbers = #tpu.dot_dimension_numbers<[1], [0], [0], [1], [0, 0, 1, 1], [], []>} : vector<16x8xf32>, vector<8x8xf32>, vector<16x8xf32> -> vector<16x8xf32>
    %c0_15 = arith.constant 0 : index
    %c0_16 = arith.constant 0 : index
    %17 = vector.load %arg7[%c0_15, %c0_16] : memref<1x8xf32, #tpu.memory_space<vmem>>, vector<1x8xf32>
    %18 = vector.broadcast %17 : vector<1x8xf32> to vector<16x8xf32>
    %19 = arith.addf %16, %18 : vector<16x8xf32>
    %cst_17 = arith.constant 0.000000e+00 : f32
    %20 = vector.broadcast %cst_17 : f32 to vector<16x8xf32>
    %21 = arith.maximumf %19, %20 : vector<16x8xf32>
    %c0_18 = arith.constant 0 : index
    %c0_19 = arith.constant 0 : index
    %22 = vector.load %arg8[%c0_18, %c0_19] : memref<16x8xf32, #tpu.memory_space<vmem>>, vector<16x8xf32>
    tpu.vector_store %arg8[%c0_18, %c0_19], %21 {strides = array<i32>} : memref<16x8xf32, #tpu.memory_space<vmem>>, vector<16x8xf32>,
    return
  }
  func.func @transform_0(%arg0: i32) -> (i32, i32) {
    %c0_i32 = arith.constant 0 : i32
    %c0_i32_0 = arith.constant 0 : i32
    return %arg0, %c0_i32 : i32, i32
  }
  func.func @transform_1(%arg0: i32) -> (i32, i32) {
    %c0_i32 = arith.constant 0 : i32
    %c0_i32_0 = arith.constant 0 : i32
    %c0_i32_1 = arith.constant 0 : i32
    return %c0_i32, %c0_i32_0 : i32, i32
  }
  func.func @transform_2(%arg0: i32) -> (i32, i32) {
    %c0_i32 = arith.constant 0 : i32
    %c0_i32_0 = arith.constant 0 : i32
    %c0_i32_1 = arith.constant 0 : i32
    return %c0_i32, %c0_i32_0 : i32, i32
  }
  func.func @transform_3(%arg0: i32) -> (i32, i32) {
    %c0_i32 = arith.constant 0 : i32
    %c0_i32_0 = arith.constant 0 : i32
    %c0_i32_1 = arith.constant 0 : i32
    return %c0_i32, %c0_i32_0 : i32, i32
  }
  func.func @transform_4(%arg0: i32) -> (i32, i32) {
    %c0_i32 = arith.constant 0 : i32
    %c0_i32_0 = arith.constant 0 : i32
    %c0_i32_1 = arith.constant 0 : i32
    return %c0_i32, %c0_i32_0 : i32, i32
  }
  func.func @transform_5(%arg0: i32) -> (i32, i32) {
    %c0_i32 = arith.constant 0 : i32
    %c0_i32_0 = arith.constant 0 : i32
    %c0_i32_1 = arith.constant 0 : i32
    return %c0_i32, %c0_i32_0 : i32, i32
  }
  func.func @transform_6(%arg0: i32) -> (i32, i32) {
    %c0_i32 = arith.constant 0 : i32
    %c0_i32_0 = arith.constant 0 : i32
    %c0_i32_1 = arith.constant 0 : i32
    return %c0_i32, %c0_i32_0 : i32, i32
  }
  func.func @transform_7(%arg0: i32) -> (i32, i32) {
    %c0_i32 = arith.constant 0 : i32
    %c0_i32_0 = arith.constant 0 : i32
    return %arg0, %c0_i32 : i32, i32
  }
}

</mosaic_0001>

<llo_original>
// kernel: tpu_custom_call.1
$region0: #{tpu_custom_call.1}
  #allocation0 [shape = 'u32[]', space=smem, size = 0x4, offset = 0x4, fixed_abs, tag = 'smem constant byte address 0x4 - core index']
  #allocation1 [shape = 'u32[72,128]{1,0:T(1,128)}', space=vmem, size = 0x9000, scoped, tag = 'internal scratch']
  %s0 = inlined_call_operand.vmem [shape: f32[64,32], index: 0, kind: input, shape index: {}]
  %s1 = inlined_call_operand.vmem [shape: f32[32,16], index: 1, kind: input, shape index: {}]
  %s2 = inlined_call_operand.vmem [shape: f32[1,16], index: 2, kind: input, shape index: {}]
  %s3 = inlined_call_operand.vmem [shape: f32[16,8], index: 3, kind: input, shape index: {}]
  %s4 = inlined_call_operand.vmem [shape: f32[1,8], index: 4, kind: input, shape index: {}]
  %s5 = inlined_call_operand.vmem [shape: f32[8,8], index: 5, kind: input, shape index: {}]
  %s6 = inlined_call_operand.vmem [shape: f32[1,8], index: 6, kind: input, shape index: {}]
  %s7 = inlined_call_operand.vmem [shape: f32[64,8], index: 7, kind: output, shape index: {}]
  %s8 = sld [smem:[#allocation0]]
  $region61: #{tpu_custom_call.1} parent=0
    _
  %s10 = ssub.s32 1, %s8
  %s11 = scalar_select 0, %s10, %s8
  loop: start=0, step=1, limit=6
  $region2: #{tpu_custom_call.1} parent=0 // loop_pre_header
    _
  $region3: #{tpu_custom_call.1} parent=0 // loop_header
    %s13 = sphi 0, %s17
    %p14 = scmp.ge.s32.totalorder %s13, 6
    %s23 = sphi 0, %s25
    %s26 = sphi 0, %s23
    %s27 = sphi 0, %s26
    %s43 = sphi 0, %s27
    %s47 = sphi 0, %s47
    %s49 = sphi 0, %s47
    %s50 = sphi 0, %s49
    %s64 = sphi 0, %s50
    %s68 = sphi 0, %s68
    %s70 = sphi 0, %s68
    %s71 = sphi 0, %s70
    %s85 = sphi 0, %s71
    %s89 = sphi 0, %s89
    %s91 = sphi 0, %s89
    %s92 = sphi 0, %s91
    %s106 = sphi 0, %s92
    %s110 = sphi 0, %s110
    %s112 = sphi 0, %s110
    %s113 = sphi 0, %s112
    %s127 = sphi 0, %s113
    %s131 = sphi 0, %s131
    %s133 = sphi 0, %s131
    %s134 = sphi 0, %s133
    %s148 = sphi 0, %s134
    %s152 = sphi 0, %s152
    %s154 = sphi 0, %s152
    %s155 = sphi 0, %s154
    %s169 = sphi 0, %s155
    %s175 = sphi 0, %s177
    %s178 = sphi 0, %s175
    %s179 = sphi 0, %s178
    %s195 = sphi 0, %s179
  $region4: #{tpu_custom_call.1} parent=0 // loop_header_branch
    %16 = sbr.rel (%p14) target = $region8
  $region5: #{tpu_custom_call.1} parent=0 // loop_body
    %s18 = ssub.s32 %s13, 1
    %s19 = ssub.s32 %s13, 2
    %s20 = sadd.s32 %s13, 1
    %s21 = ssub.s32 %s13, %s20
    %p22 = scmp.eq.s32.totalorder %s21, 0
    %s24 = sadd.s32 %s23, 1
    %s25 = scalar_select %p22, %s23, %s24
    %p28 = pneg %p22
    %p29 = scmp.eq.s32.totalorder %s13, 3
    %p30 = por %p28, %p29
    %p31 = scmp.ne.s32.totalorder %s23, %s26
    %p32 = scmp.eq.s32.totalorder %s13, 0
    %p33 = por %p31, %p32
    %p34 = scmp.ne.s32.totalorder %s23, %s26
    %p35 = scmp.eq.s32.totalorder %s18, 3
    %p36 = por %p34, %p35
    %p37 = scmp.ne.s32.totalorder %s26, %s27
    %p38 = scmp.eq.s32.totalorder %s18, 0
    %p39 = por %p37, %p38
    %p40 = scmp.ne.s32.totalorder %s26, %s27
    %p41 = scmp.eq.s32.totalorder %s19, 3
    %p42 = por %p40, %p41
    %p44 = scmp.ne.s32.totalorder %s27, %s43
    %p45 = scmp.eq.s32.totalorder %s19, 0
    %p46 = por %p44, %p45
    %s48 = sadd.s32 %s47, 1
    %p51 = scmp.eq.s32.totalorder %s13, 3
    %p52 = scmp.ne.s32.totalorder %s47, %s49
    %p53 = scmp.eq.s32.totalorder %s13, 0
    %p54 = por %p52, %p53
    %p55 = scmp.ne.s32.totalorder %s47, %s49
    %p56 = scmp.eq.s32.totalorder %s18, 3
    %p57 = por %p55, %p56
    %p58 = scmp.ne.s32.totalorder %s49, %s50
    %p59 = scmp.eq.s32.totalorder %s18, 0
    %p60 = por %p58, %p59
    %p61 = scmp.ne.s32.totalorder %s49, %s50
    %p62 = scmp.eq.s32.totalorder %s19, 3
    %p63 = por %p61, %p62
    %p65 = scmp.ne.s32.totalorder %s50, %s64
    %p66 = scmp.eq.s32.totalorder %s19, 0
    %p67 = por %p65, %p66
    %s69 = sadd.s32 %s68, 1
    %p72 = scmp.eq.s32.totalorder %s13, 3
    %p73 = scmp.ne.s32.totalorder %s68, %s70
    %p74 = scmp.eq.s32.totalorder %s13, 0
    %p75 = por %p73, %p74
    %p76 = scmp.ne.s32.totalorder %s68, %s70
    %p77 = scmp.eq.s32.totalorder %s18, 3
    %p78 = por %p76, %p77
    %p79 = scmp.ne.s32.totalorder %s70, %s71
    %p80 = scmp.eq.s32.totalorder %s18, 0
    %p81 = por %p79, %p80
    %p82 = scmp.ne.s32.totalorder %s70, %s71
    %p83 = scmp.eq.s32.totalorder %s19, 3
    %p84 = por %p82, %p83
    %p86 = scmp.ne.s32.totalorder %s71, %s85
    %p87 = scmp.eq.s32.totalorder %s19, 0
    %p88 = por %p86, %p87
    %s90 = sadd.s32 %s89, 1
    %p93 = scmp.eq.s32.totalorder %s13, 3
    %p94 = scmp.ne.s32.totalorder %s89, %s91
    %p95 = scmp.eq.s32.totalorder %s13, 0
    %p96 = por %p94, %p95
    %p97 = scmp.ne.s32.totalorder %s89, %s91
    %p98 = scmp.eq.s32.totalorder %s18, 3
    %p99 = por %p97, %p98
    %p100 = scmp.ne.s32.totalorder %s91, %s92
    %p101 = scmp.eq.s32.totalorder %s18, 0
    %p102 = por %p100, %p101
    %p103 = scmp.ne.s32.totalorder %s91, %s92
    %p104 = scmp.eq.s32.totalorder %s19, 3
    %p105 = por %p103, %p104
    %p107 = scmp.ne.s32.totalorder %s92, %s106
    %p108 = scmp.eq.s32.totalorder %s19, 0
    %p109 = por %p107, %p108
    %s111 = sadd.s32 %s110, 1
    %p114 = scmp.eq.s32.totalorder %s13, 3
    %p115 = scmp.ne.s32.totalorder %s110, %s112
    %p116 = scmp.eq.s32.totalorder %s13, 0
    %p117 = por %p115, %p116
    %p118 = scmp.ne.s32.totalorder %s110, %s112
    %p119 = scmp.eq.s32.totalorder %s18, 3
    %p120 = por %p118, %p119
    %p121 = scmp.ne.s32.totalorder %s112, %s113
    %p122 = scmp.eq.s32.totalorder %s18, 0
    %p123 = por %p121, %p122
    %p124 = scmp.ne.s32.totalorder %s112, %s113
    %p125 = scmp.eq.s32.totalorder %s19, 3
    %p126 = por %p124, %p125
    %p128 = scmp.ne.s32.totalorder %s113, %s127
    %p129 = scmp.eq.s32.totalorder %s19, 0
    %p130 = por %p128, %p129
    %s132 = sadd.s32 %s131, 1
    %p135 = scmp.eq.s32.totalorder %s13, 3
    %p136 = scmp.ne.s32.totalorder %s131, %s133
    %p137 = scmp.eq.s32.totalorder %s13, 0
    %p138 = por %p136, %p137
    %p139 = scmp.ne.s32.totalorder %s131, %s133
    %p140 = scmp.eq.s32.totalorder %s18, 3
    %p141 = por %p139, %p140
    %p142 = scmp.ne.s32.totalorder %s133, %s134
    %p143 = scmp.eq.s32.totalorder %s18, 0
    %p144 = por %p142, %p143
    %p145 = scmp.ne.s32.totalorder %s133, %s134
    %p146 = scmp.eq.s32.totalorder %s19, 3
    %p147 = por %p145, %p146
    %p149 = scmp.ne.s32.totalorder %s134, %s148
    %p150 = scmp.eq.s32.totalorder %s19, 0
    %p151 = por %p149, %p150
    %s153 = sadd.s32 %s152, 1
    %p156 = scmp.eq.s32.totalorder %s13, 3
    %p157 = scmp.ne.s32.totalorder %s152, %s154
    %p158 = scmp.eq.s32.totalorder %s13, 0
    %p159 = por %p157, %p158
    %p160 = scmp.ne.s32.totalorder %s152, %s154
    %p161 = scmp.eq.s32.totalorder %s18, 3
    %p162 = por %p160, %p161
    %p163 = scmp.ne.s32.totalorder %s154, %s155
    %p164 = scmp.eq.s32.totalorder %s18, 0
    %p165 = por %p163, %p164
    %p166 = scmp.ne.s32.totalorder %s154, %s155
    %p167 = scmp.eq.s32.totalorder %s19, 3
    %p168 = por %p166, %p167
    %p170 = scmp.ne.s32.totalorder %s155, %s169
    %p171 = scmp.eq.s32.totalorder %s19, 0
    %p172 = por %p170, %p171
    %s173 = ssub.s32 %s13, %s20
    %p174 = scmp.eq.s32.totalorder %s173, 0
    %s176 = sadd.s32 %s175, 1
    %s177 = scalar_select %p174, %s175, %s176
    %p180 = pneg %p174
    %p181 = scmp.eq.s32.totalorder %s13, 3
    %p182 = por %p180, %p181
    %p183 = scmp.ne.s32.totalorder %s175, %s178
    %p184 = scmp.eq.s32.totalorder %s13, 0
    %p185 = por %p183, %p184
    %p186 = scmp.ne.s32.totalorder %s175, %s178
    %p187 = scmp.eq.s32.totalorder %s18, 3
    %p188 = por %p186, %p187
    %p189 = scmp.ne.s32.totalorder %s178, %s179
    %p190 = scmp.eq.s32.totalorder %s18, 0
    %p191 = por %p189, %p190
    %p192 = scmp.ne.s32.totalorder %s178, %s179
    %p193 = scmp.eq.s32.totalorder %s19, 3
    %p194 = por %p192, %p193
    %p196 = scmp.ne.s32.totalorder %s179, %s195
    %p197 = scmp.eq.s32.totalorder %s19, 0
    %p198 = por %p196, %p197
    %p199 = scmp.le.s32.totalorder 1, %s13
    %p200 = scmp.lt.s32.totalorder %s13, 5
    %p201 = pnand %p199, %p200
    %p202 = pneg %p201
    // Predicated region
    $region9: #{tpu_custom_call.1} parent=5 // pred_check
      _
    $region10: #{tpu_custom_call.1} parent=5 // pred_check_branch
      %204 = sbr.rel (%p201) target = $region12
    $region11: #{tpu_custom_call.1} parent=5 // pred_region
      %s205 = ssub.s32 %s13, 1
      // Predicated region
      $region13: #{tpu_custom_call.1} parent=11 // pred_check
        %p206 = pneg %p60
      $region14: #{tpu_custom_call.1} parent=11 // pred_check_branch
        %208 = sbr.rel (%p206) target = $region16
      $region15: #{tpu_custom_call.1} parent=11 // pred_region
        _
      $region16: #{tpu_custom_call.1} parent=11 // pred_fallthru
        _
      // Predicated region
      $region17: #{tpu_custom_call.1} parent=11 // pred_check
        %p209 = pneg %p81
      $region18: #{tpu_custom_call.1} parent=11 // pred_check_branch
        %211 = sbr.rel (%p209) target = $region20
      $region19: #{tpu_custom_call.1} parent=11 // pred_region
        _
      $region20: #{tpu_custom_call.1} parent=11 // pred_fallthru
        _
      // Predicated region
      $region21: #{tpu_custom_call.1} parent=11 // pred_check
        %p212 = pneg %p102
      $region22: #{tpu_custom_call.1} parent=11 // pred_check_branch
        %214 = sbr.rel (%p212) target = $region24
      $region23: #{tpu_custom_call.1} parent=11 // pred_region
        _
      $region24: #{tpu_custom_call.1} parent=11 // pred_fallthru
        _
      // Predicated region
      $region25: #{tpu_custom_call.1} parent=11 // pred_check
        %p215 = pneg %p123
      $region26: #{tpu_custom_call.1} parent=11 // pred_check_branch
        %217 = sbr.rel (%p215) target = $region28
      $region27: #{tpu_custom_call.1} parent=11 // pred_region
        _
      $region28: #{tpu_custom_call.1} parent=11 // pred_fallthru
        _
      // Predicated region
      $region29: #{tpu_custom_call.1} parent=11 // pred_check
        %p218 = pneg %p144
      $region30: #{tpu_custom_call.1} parent=11 // pred_check_branch
        %220 = sbr.rel (%p218) target = $region32
      $region31: #{tpu_custom_call.1} parent=11 // pred_region
        _
      $region32: #{tpu_custom_call.1} parent=11 // pred_fallthru
        _
      // Predicated region
      $region33: #{tpu_custom_call.1} parent=11 // pred_check
        %p221 = pneg %p165
      $region34: #{tpu_custom_call.1} parent=11 // pred_check_branch
        %223 = sbr.rel (%p221) target = $region36
      $region35: #{tpu_custom_call.1} parent=11 // pred_region
        _
      $region36: #{tpu_custom_call.1} parent=11 // pred_fallthru
        _
    $region12: #{tpu_custom_call.1} parent=5 // pred_fallthru
      _
    %p224 = scmp.lt.s32.totalorder %s13, 4
    // Predicated region
    $region37: #{tpu_custom_call.1} parent=5 // pred_check
      %p225 = pneg %p224
    $region38: #{tpu_custom_call.1} parent=5 // pred_check_branch
      %227 = sbr.rel (%p225) target = $region40
    $region39: #{tpu_custom_call.1} parent=5 // pred_region
      // Predicated region
      $region41: #{tpu_custom_call.1} parent=39 // pred_check
        %p228 = pneg %p33
      $region42: #{tpu_custom_call.1} parent=39 // pred_check_branch
        %230 = sbr.rel (%p228) target = $region44
      $region43: #{tpu_custom_call.1} parent=39 // pred_region
        %s231 = smul.u32 2, %s13
        %p232 = scmp.lt.s32.totalorder %s231, 7
        %s233 = scalar_select %p232, %s231, 7
        %s234 = smul.addr %s233, 8
        %s235 = scalar_lea.vmem %s0, %s234
        %s236 = smul.u32 2, %s13
      $region44: #{tpu_custom_call.1} parent=39 // pred_fallthru
        _
    $region40: #{tpu_custom_call.1} parent=5 // pred_fallthru
      _
    %p237 = scmp.le.s32.totalorder 1, %s13
    %p238 = scmp.lt.s32.totalorder %s13, 5
    %p239 = pnand %p237, %p238
    %p240 = pneg %p239
    // Predicated region
    $region45: #{tpu_custom_call.1} parent=5 // pred_check
      _
    $region46: #{tpu_custom_call.1} parent=5 // pred_check_branch
      %242 = sbr.rel (%p239) target = $region48
    $region47: #{tpu_custom_call.1} parent=5 // pred_region
      %s243 = ssub.s32 %s13, 1
      %s244 = smul.u32 2, %s18
      %p245 = scmp.lt.s32.totalorder %s244, 7
      %s246 = scalar_select %p245, %s244, 7
      %s247 = smul.addr %s246, 8
      %s248 = scalar_lea.vmem %s0, %s247
      %p249 = pneg %p39
      %p250 = pneg %p36
      %p251 = pneg %p60
      %p252 = pneg %p57
      %p253 = pneg %p81
      %p254 = pneg %p78
      %p255 = pneg %p102
      %p256 = pneg %p99
      %p257 = pneg %p123
      %p258 = pneg %p120
      %p259 = pneg %p144
      %p260 = pneg %p141
      %p261 = pneg %p165
      %p262 = pneg %p162
      %p263 = pneg %p191
      %p264 = pneg %p188
      %s265 = smul.u32 2, %s18
      %p266 = scmp.lt.s32.totalorder %s265, 7
      %s267 = scalar_select %p266, %s265, 7
      %s268 = smul.addr %s267, 8
      %s269 = scalar_lea.vmem %s7, %s268
      %s270 = smul.u32 2, %s18
      %p271 = scmp.lt.s32.totalorder %s270, 7
      %s272 = scalar_select %p271, %s270, 7
      %s273 = smul.addr %s272, 8
      %s274 = scalar_lea.vmem %s0, %s273
      %s275 = smul.u32 2, %s18
      %s276 = smul.u32 2, %s18
      %p277 = scmp.lt.s32.totalorder %s276, 7
      %s278 = scalar_select %p277, %s276, 7
      %s279 = smul.addr %s278, 8
      %s280 = scalar_lea.vmem %s7, %s279
      %s281 = smul.u32 2, %s18
      %v282 = vld [vmem:[%s274] sm:$0xff]
      %v283 = vld [vmem:[%s274 + $0x8] sm:$0xff]
      %v284 = vld [vmem:[%s1] sm:$0xff]
      %v285 = vld [vmem:[%s1 + $0x8] sm:$0xff]
      %v286 = vld [vmem:[%s1 + $0x10] sm:$0xff]
      %v287 = vld [vmem:[%s1 + $0x18] sm:$0xff]
      %v288 = vld [vmem:[%s2] sm:$0x1]
      %v290 = vperm.slane %v288, 0
      %vm292 = vcmask 261120
      %v294 = vsel %vm292, %v282, 0
      %v297 = vsel %vm292, %v283, 0
      %299 = vmatpush.msra.mxu0 0.0
      %300 = vmatpush.msra.mxu0 0.0
      %301 = vmatpush.msra.mxu0 0.0
      %302 = vmatpush.msra.mxu0 0.0
      %303 = vmatpush.msra.mxu0 0.0
      %304 = vmatpush.msra.mxu0 0.0
      %305 = vmatpush.msra.mxu0 0.0
      %306 = vmatpush.msra.mxu0 0.0
      %307 = vmatpush.msra.mxu0 0.0
      %308 = vmatpush.msra.mxu0 0.0
      %309 = vmatpush.msra.mxu0 0.0
      %310 = vmatpush.msra.mxu0 0.0
      %311 = vmatpush.msra.mxu0 %v287
      %312 = vmatpush.msra.mxu0 %v286
      %313 = vmatpush.msra.mxu0 %v285
      %314 = vmatpush.msra.mxu0 %v284
      %315 = vmatmul.f32.gmra.mxu0 %v294
      %v316 = vpop.f32.mrf.mxu0
      %v317 = vadd.f32 %v290, %v316
      %318 = vmatmul.f32.gmra.mxu0 %v297
      %v319 = vpop.f32.mrf.mxu0
      %v320 = vadd.f32 %v290, %v319
      %321 = vdwg.mxu0
      %v322 = vmax.f32 %v317, 0.0
      %v323 = vmax.f32 %v320, 0.0
      %v324 = vld [vmem:[%s3] sm:$0xff]
      %v325 = vld [vmem:[%s3 + $0x8] sm:$0xff]
      %v326 = vld [vmem:[%s4] sm:$0x1]
      %v328 = vperm.slane %v326, 0
      %vm330 = vcmask 130048
      %v332 = vsel %vm330, %v322, 0
      %v335 = vsel %vm330, %v323, 0
      %337 = vmatpush.msra.mxu0 0.0
      %338 = vmatpush.msra.mxu0 0.0
      %339 = vmatpush.msra.mxu0 0.0
      %340 = vmatpush.msra.mxu0 0.0
      %341 = vmatpush.msra.mxu0 0.0
      %342 = vmatpush.msra.mxu0 0.0
      %343 = vmatpush.msra.mxu0 0.0
      %344 = vmatpush.msra.mxu0 0.0
      %345 = vmatpush.msra.mxu0 0.0
      %346 = vmatpush.msra.mxu0 0.0
      %347 = vmatpush.msra.mxu0 0.0
      %348 = vmatpush.msra.mxu0 0.0
      %349 = vmatpush.msra.mxu0 0.0
      %350 = vmatpush.msra.mxu0 0.0
      %351 = vmatpush.msra.mxu0 %v325
      %352 = vmatpush.msra.mxu0 %v324
      %353 = vmatmul.f32.gmra.mxu0 %v332
      %v354 = vpop.f32.mrf.mxu0
      %v355 = vadd.f32 %v328, %v354
      %356 = vmatmul.f32.gmra.mxu0 %v335
      %v357 = vpop.f32.mrf.mxu0
      %v358 = vadd.f32 %v328, %v357
      %359 = vdwg.mxu0
      %v360 = vmax.f32 %v355, 0.0
      %v361 = vmax.f32 %v358, 0.0
      %v362 = vld [vmem:[%s5] sm:$0xff]
      %v363 = vld [vmem:[%s6] sm:$0x1]
      %v365 = vperm.slane %v363, 0
      %vm367 = vcmask 64512
      %v369 = vsel %vm367, %v360, 0
      %v372 = vsel %vm367, %v361, 0
      %374 = vmatpush.msra.mxu0 0.0
      %375 = vmatpush.msra.mxu0 0.0
      %376 = vmatpush.msra.mxu0 0.0
      %377 = vmatpush.msra.mxu0 0.0
      %378 = vmatpush.msra.mxu0 0.0
      %379 = vmatpush.msra.mxu0 0.0
      %380 = vmatpush.msra.mxu0 0.0
      %381 = vmatpush.msra.mxu0 0.0
      %382 = vmatpush.msra.mxu0 0.0
      %383 = vmatpush.msra.mxu0 0.0
      %384 = vmatpush.msra.mxu0 0.0
      %385 = vmatpush.msra.mxu0 0.0
      %386 = vmatpush.msra.mxu0 0.0
      %387 = vmatpush.msra.mxu0 0.0
      %388 = vmatpush.msra.mxu0 0.0
      %389 = vmatpush.msra.mxu0 %v362
      %390 = vmatmul.f32.gmra.mxu0 %v369
      %v391 = vpop.f32.mrf.mxu0
      %v392 = vadd.f32 %v365, %v391
      %393 = vmatmul.f32.gmra.mxu0 %v372
      %v394 = vpop.f32.mrf.mxu0
      %v395 = vadd.f32 %v365, %v394
      %396 = vdwg.mxu0
      %v397 = vmax.f32 %v392, 0.0
      %v398 = vmax.f32 %v395, 0.0
      %399 = vst.msk [vmem:[%s280] sm:$0xff] %vm367, %v397
      %400 = vst.msk [vmem:[%s280 + $0x8] sm:$0xff] %vm367, %v398
      %s401 = smul.u32 2, %s18
      %p402 = scmp.lt.s32.totalorder %s401, 7
      %s403 = scalar_select %p402, %s401, 7
      %s404 = smul.addr %s403, 8
      %s405 = scalar_lea.vmem %s7, %s404
      // Predicated region
      $region49: #{tpu_custom_call.1} parent=47 // pred_check
        %p406 = pneg %p188
      $region50: #{tpu_custom_call.1} parent=47 // pred_check_branch
        %408 = sbr.rel (%p406) target = $region52
      $region51: #{tpu_custom_call.1} parent=47 // pred_region
        %s409 = smul.u32 2, %s18
      $region52: #{tpu_custom_call.1} parent=47 // pred_fallthru
        _
    $region48: #{tpu_custom_call.1} parent=5 // pred_fallthru
      _
    %p410 = scmp.le.s32.totalorder 2, %s13
    // Predicated region
    $region53: #{tpu_custom_call.1} parent=5 // pred_check
      %p411 = pneg %p410
    $region54: #{tpu_custom_call.1} parent=5 // pred_check_branch
      %413 = sbr.rel (%p411) target = $region56
    $region55: #{tpu_custom_call.1} parent=5 // pred_region
      %s414 = ssub.s32 %s13, 2
      // Predicated region
      $region57: #{tpu_custom_call.1} parent=55 // pred_check
        %p415 = pneg %p194
      $region58: #{tpu_custom_call.1} parent=55 // pred_check_branch
        %417 = sbr.rel (%p415) target = $region60
      $region59: #{tpu_custom_call.1} parent=55 // pred_region
        %s418 = smul.u32 2, %s19
        %p419 = scmp.lt.s32.totalorder %s418, 7
        %s420 = scalar_select %p419, %s418, 7
        %s421 = smul.addr %s420, 8
        %s422 = scalar_lea.vmem %s7, %s421
      $region60: #{tpu_custom_call.1} parent=55 // pred_fallthru
        _
    $region56: #{tpu_custom_call.1} parent=5 // pred_fallthru
      _
  $region6: #{tpu_custom_call.1} parent=0 // loop_footer
    %s17 = sadd.s32 1, %s13
  $region7: #{tpu_custom_call.1} parent=0 // loop_footer_branch
    %12 = sbr.rel target = $region3
  $region8: #{tpu_custom_call.1} parent=0 // loop_exit
    _

</llo_original>
